<compile_context>
chip_gen: v5e
topology: v5e:2x2
jax: 0.10.0
libtpu: 0.0.40
codegen_flags: <defaults>
</compile_context>

<pallas_src>
import functools

import jax
import jax.numpy as jnp
from jax.experimental import pallas as pl
from jax.experimental.pallas import tpu as pltpu


def _mlp_body(x_ref, w1_ref, b1_ref, w2_ref, b2_ref):
    """Shared Linear->ReLU->Linear->ReLU prefix (MXU matmuls, f32 accumulate,
    f32 bias+ReLU on the VPU)."""
    x = x_ref[...].astype(w1_ref.dtype)   # cast VMEM tile to MXU compute dtype
    h1 = jnp.dot(x, w1_ref[...], preferred_element_type=jnp.float32)
    h1 = jnp.maximum(h1 + b1_ref[...], 0.0)
    h2 = jnp.dot(h1.astype(w2_ref.dtype), w2_ref[...],
                 preferred_element_type=jnp.float32)
    h2 = jnp.maximum(h2 + b2_ref[...], 0.0)
    return h2


def mlp_kernel_vpu_head(x_ref, w1_ref, b1_ref, w2_ref, b2_ref,
                        w3r_ref, b3_ref, o_ref):
    """output_size == 1 head: VPU multiply + lane reduction (no MXU pass,
    no padded output columns). w3r_ref is the head weight pre-transposed to a
    (1, H2) lane row; the reduction runs in f32."""
    h2 = _mlp_body(x_ref, w1_ref, b1_ref, w2_ref, b2_ref)
    w3_row = w3r_ref[...].astype(jnp.float32)                 # (1, H2)
    out = jnp.sum(h2 * w3_row, axis=-1, keepdims=True)        # (bb, 1)
    o_ref[...] = (out + b3_ref[...]).astype(o_ref.dtype)


def mlp_kernel_dot_head(x_ref, w1_ref, b1_ref, w2_ref, b2_ref,
                        w3_ref, b3_ref, o_ref):
    """General-O head: unpadded MXU dot, only real columns stored."""
    h2 = _mlp_body(x_ref, w1_ref, b1_ref, w2_ref, b2_ref)
    out = jnp.dot(h2.astype(w3_ref.dtype), w3_ref[...],
                  preferred_element_type=jnp.float32)
    o_ref[...] = (out + b3_ref[...]).astype(o_ref.dtype)


def _round_up(n, m):
    return ((n + m - 1) // m) * m


def prepare_mlp_params(params, compute_dtype=jnp.bfloat16):
    """One-time weight prep, hoisted out of the per-call hot path:
      * cast weights to the MXU compute dtype (bf16 default perf path),
      * pre-transpose the O==1 head weight to a (1, H2) lane row,
      * keep biases in f32 (bias add / ReLU stay on the f32 VPU path).
    Returns a flat tuple (w1, b1, w2, b2, w3, b3)."""
    (w1, b1), (w2, b2), (w3, b3) = params
    O = w3.shape[1]
    w1 = w1.astype(compute_dtype)
    w2 = w2.astype(compute_dtype)
    if O == 1:
        w3 = w3.astype(compute_dtype).T          # (1, H2) row for the VPU head
    else:
        w3 = w3.astype(compute_dtype)            # (H2, O), unpadded
    return (w1, b1.astype(jnp.float32), w2, b2.astype(jnp.float32),
            w3, b3.astype(jnp.float32))


@functools.partial(jax.jit, static_argnames=("block_b",))
def mlp_forward(x, w1, b1, w2, b2, w3, b3, *, block_b=512):
    B, F = x.shape
    H1 = w1.shape[1]
    H2 = w2.shape[1]
    O = b3.shape[1]
    # Head layout flag (derived from prepared shapes): (1, H2) => VPU head.
    vpu_head = (O == 1) and (w3.shape == (1, H2))

    # --- batch tiling -------------------------------------------------------
    block_b = _round_up(block_b, 8)
    B8 = _round_up(B, 8)
    if B8 <= block_b:
        # Small batch: a single grid step, full tile in one MXU pass.
        bb = B8
    else:
        # Large batch: pick an even, balanced tile count (>= 2) so the
        # "parallel" batch axis can split across both TensorCores on v7x.
        n_pairs = pl.cdiv(B8, 2 * block_b)
        bb = min(_round_up(pl.cdiv(B8, 2 * n_pairs), 8), block_b)
    n_tiles = pl.cdiv(B8, bb)
    B_pad = n_tiles * bb
    if B_pad != B:
        x = jnp.pad(x, ((0, B_pad - B), (0, 0)))   # tail rows sliced off below

    kernel = mlp_kernel_vpu_head if vpu_head else mlp_kernel_dot_head
    w3_block = (1, H2) if vpu_head else (H2, O)

    const = lambda i: (0, 0)  # constant-block index map (weights/biases)

    out = pl.pallas_call(
        kernel,
        out_shape=jax.ShapeDtypeStruct((B_pad, O), jnp.float32),
        grid=(n_tiles,),
        in_specs=[
            # batch-tiled activations: double-buffered by default.
            pl.BlockSpec((bb, F), lambda i: (i, 0)),
            # weights / biases: constant blocks -> single buffer, VMEM-resident.
            pl.BlockSpec((F, H1), const, pipeline_mode=pl.Buffered(1)),
            pl.BlockSpec((1, H1), const, pipeline_mode=pl.Buffered(1)),
            pl.BlockSpec((H1, H2), const, pipeline_mode=pl.Buffered(1)),
            pl.BlockSpec((1, H2), const, pipeline_mode=pl.Buffered(1)),
            pl.BlockSpec(w3_block, const, pipeline_mode=pl.Buffered(1)),
            pl.BlockSpec((1, O), const, pipeline_mode=pl.Buffered(1)),
        ],
        out_specs=pl.BlockSpec((bb, O), lambda i: (i, 0)),
        compiler_params=pltpu.CompilerParams(
            # Parallel batch axis -> shardable across both TCs on v7x once the
            # grid has >= 2 steps. VMEM footprint here is < 0.5 MiB; set
            # vmem_limit_bytes (and add a hidden-dim "arbitrary" axis with a
            # f32 accumulator) if F / hidden sizes grow into the thousands.
            dimension_semantics=("parallel",)),
    )(x, w1, b1, w2, b2, w3, b3)

    # strip batch padding; output columns were never padded.
    return out[:B, :]


def init_mlp_params(key, input_size, output_size=1, hidden_sizes=(256, 256)):
    """Deterministic init mimicking nn.Linear's U(-1/sqrt(fan_in), 1/sqrt(fan_in)).
    Returns weights already transposed to (in, out)."""
    sizes = (input_size,) + tuple(hidden_sizes) + (output_size,)
    params = []
    for dim_in, dim_out in zip(sizes[:-1], sizes[1:]):
        key, kw, kb = jax.random.split(key, 3)
        bound = 1.0 / jnp.sqrt(dim_in)
        w = jax.random.uniform(kw, (dim_in, dim_out), jnp.float32, -bound, bound)
        b = jax.random.uniform(kb, (1, dim_out), jnp.float32, -bound, bound)
        params.append((w, b))
    return params


def reference_mlp(x, params):
    h = x
    n = len(params)
    for idx, (w, b) in enumerate(params):
        h = h @ w + b
        if idx < n - 1:
            h = jnp.maximum(h, 0.0)
    return h


if __name__ == "__main__":
    # TODO(synk): nn.Dropout branch (drop_prob > 0) not implemented; module
    # default drop_prob=0.0 makes it an identity, which this kernel matches.
    key = jax.random.PRNGKey(0)
    k_in, k_param, k_in2, k_param2 = jax.random.split(key, 4)

    B = 16            # batch
    INPUT_SIZE = 32   # input features
    HIDDEN = (256, 256)
    OUTPUT_SIZE = 1

    x = jax.random.normal(k_in, (B, INPUT_SIZE), jnp.float32)
    params = init_mlp_params(k_param, INPUT_SIZE, OUTPUT_SIZE, HIDDEN)
    ref = reference_mlp(x, params)

    # 1) exact-semantics f32 path (single grid step, VPU O=1 head)
    prep_f32 = prepare_mlp_params(params, compute_dtype=jnp.float32)
    out = mlp_forward(x, *prep_f32)
    out = jax.block_until_ready(out)
    assert out.shape == (B, OUTPUT_SIZE), out.shape
    assert jnp.allclose(out, ref, atol=1e-4, rtol=1e-4), "f32 mismatch vs reference"

    # 2) default bf16 MXU-operand perf path (f32 accumulation) — loose tolerance
    prep_bf16 = prepare_mlp_params(params)   # compute_dtype defaults to bf16
    out_bf16 = mlp_forward(x, *prep_bf16)
    out_bf16 = jax.block_until_ready(out_bf16)
    assert jnp.allclose(out_bf16, ref, atol=1e-1, rtol=5e-2), "bf16 mismatch vs reference"

    # 3) bigger, non-divisible batch with a small block_b to force a multi-tile
    #    grid: exercises the balanced even-tile split + zero-padded tail.
    B2 = 300
    x2 = jax.random.normal(k_in2, (B2, INPUT_SIZE), jnp.float32)
    ref2 = reference_mlp(x2, params)
    out2 = mlp_forward(x2, *prep_f32, block_b=128)
    out2 = jax.block_until_ready(out2)
    assert out2.shape == (B2, OUTPUT_SIZE), out2.shape
    assert jnp.allclose(out2, ref2, atol=1e-4, rtol=1e-4), "tail-tile mismatch vs reference"

    # 4) general output_size > 1 path (unpadded MXU dot head)
    OUT4 = 4
    params4 = init_mlp_params(k_param2, INPUT_SIZE, OUT4, HIDDEN)
    ref4 = reference_mlp(x, params4)
    prep4 = prepare_mlp_params(params4, compute_dtype=jnp.float32)
    out4 = mlp_forward(x, *prep4)
    out4 = jax.block_until_ready(out4)
    assert out4.shape == (B, OUT4), out4.shape
    assert jnp.allclose(out4, ref4, atol=1e-4, rtol=1e-4), "dot-head mismatch vs reference"

    print("KERNEL_OK")
</pallas_src>

<mosaic_0001>
module attributes {stable_mosaic.version = 11 : i64} {
  func.func @mlp_kernel_vpu_head(%arg0: i32, %arg1: memref<16x32xf32, #tpu.memory_space<vmem>>, %arg2: memref<32x256xf32, #tpu.memory_space<vmem>>, %arg3: memref<1x256xf32, #tpu.memory_space<vmem>>, %arg4: memref<256x256xf32, #tpu.memory_space<vmem>>, %arg5: memref<1x256xf32, #tpu.memory_space<vmem>>, %arg6: memref<1x256xf32, #tpu.memory_space<vmem>>, %arg7: memref<1x1xf32, #tpu.memory_space<vmem>>, %arg8: memref<16x1xf32, #tpu.memory_space<vmem>>) attributes {dimension_semantics = [#tpu.dimension_semantics<parallel>], iteration_bounds = array<i64: 1>, scalar_prefetch = 0 : i64, scratch_operands = 0 : i64, tpu.core_type = #tpu.core_type<tc>, window_params = [{transform_indices = @transform_0, window_bounds = array<i64: 16, 32>}, {pipeline_mode = #tpu.pipeline_mode<synchronous>, transform_indices = @transform_1, window_bounds = array<i64: 32, 256>}, {pipeline_mode = #tpu.pipeline_mode<synchronous>, transform_indices = @transform_2, window_bounds = array<i64: 1, 256>}, {pipeline_mode = #tpu.pipeline_mode<synchronous>, transform_indices = @transform_3, window_bounds = array<i64: 256, 256>}, {pipeline_mode = #tpu.pipeline_mode<synchronous>, transform_indices = @transform_4, window_bounds = array<i64: 1, 256>}, {pipeline_mode = #tpu.pipeline_mode<synchronous>, transform_indices = @transform_5, window_bounds = array<i64: 1, 256>}, {pipeline_mode = #tpu.pipeline_mode<synchronous>, transform_indices = @transform_6, window_bounds = array<i64: 1, 1>}, {transform_indices = @transform_7, window_bounds = array<i64: 16, 1>}]} {
    %c0 = arith.constant 0 : index
    %c0_0 = arith.constant 0 : index
    %0 = vector.load %arg1[%c0, %c0_0] : memref<16x32xf32, #tpu.memory_space<vmem>>, vector<16x32xf32>
    %c0_1 = arith.constant 0 : index
    %c0_2 = arith.constant 0 : index
    %1 = vector.load %arg2[%c0_1, %c0_2] : memref<32x256xf32, #tpu.memory_space<vmem>>, vector<32x256xf32>
    %cst = arith.constant dense<0.000000e+00> : vector<16x256xf32>
    %2 = tpu.matmul %0, %1, %cst {dimension_numbers = #tpu.dot_dimension_numbers<[1], [0], [0], [1], [0, 0, 1, 1], [], []>} : vector<16x32xf32>, vector<32x256xf32>, vector<16x256xf32> -> vector<16x256xf32>
    %c0_3 = arith.constant 0 : index
    %c0_4 = arith.constant 0 : index
    %3 = vector.load %arg3[%c0_3, %c0_4] : memref<1x256xf32, #tpu.memory_space<vmem>>, vector<1x256xf32>
    %4 = vector.broadcast %3 : vector<1x256xf32> to vector<16x256xf32>
    %5 = arith.addf %2, %4 : vector<16x256xf32>
    %cst_5 = arith.constant 0.000000e+00 : f32
    %6 = vector.broadcast %cst_5 : f32 to vector<16x256xf32>
    %7 = arith.maximumf %5, %6 : vector<16x256xf32>
    %c0_6 = arith.constant 0 : index
    %c0_7 = arith.constant 0 : index
    %8 = vector.load %arg4[%c0_6, %c0_7] : memref<256x256xf32, #tpu.memory_space<vmem>>, vector<256x256xf32>
    %cst_8 = arith.constant dense<0.000000e+00> : vector<16x256xf32>
    %9 = tpu.matmul %7, %8, %cst_8 {dimension_numbers = #tpu.dot_dimension_numbers<[1], [0], [0], [1], [0, 0, 1, 1], [], []>} : vector<16x256xf32>, vector<256x256xf32>, vector<16x256xf32> -> vector<16x256xf32>
    %c0_9 = arith.constant 0 : index
    %c0_10 = arith.constant 0 : index
    %10 = vector.load %arg5[%c0_9, %c0_10] : memref<1x256xf32, #tpu.memory_space<vmem>>, vector<1x256xf32>
    %11 = vector.broadcast %10 : vector<1x256xf32> to vector<16x256xf32>
    %12 = arith.addf %9, %11 : vector<16x256xf32>
    %cst_11 = arith.constant 0.000000e+00 : f32
    %13 = vector.broadcast %cst_11 : f32 to vector<16x256xf32>
    %14 = arith.maximumf %12, %13 : vector<16x256xf32>
    %c0_12 = arith.constant 0 : index
    %c0_13 = arith.constant 0 : index
    %15 = vector.load %arg6[%c0_12, %c0_13] : memref<1x256xf32, #tpu.memory_space<vmem>>, vector<1x256xf32>
    %16 = vector.broadcast %15 : vector<1x256xf32> to vector<16x256xf32>
    %17 = arith.mulf %14, %16 : vector<16x256xf32>
    %cst_14 = arith.constant dense<0.000000e+00> : vector<16xf32>
    %18 = vector.multi_reduction <add>, %17, %cst_14 [1] : vector<16x256xf32> to vector<16xf32>
    %19 = vector.shape_cast %18 : vector<16xf32> to vector<16x1xf32>
    %c0_15 = arith.constant 0 : index
    %c0_16 = arith.constant 0 : index
    %20 = vector.load %arg7[%c0_15, %c0_16] : memref<1x1xf32, #tpu.memory_space<vmem>>, vector<1x1xf32>
    %21 = vector.broadcast %20 : vector<1x1xf32> to vector<16x1xf32>
    %22 = arith.addf %19, %21 : vector<16x1xf32>
    %c0_17 = arith.constant 0 : index
    %c0_18 = arith.constant 0 : index
    %23 = vector.load %arg8[%c0_17, %c0_18] : memref<16x1xf32, #tpu.memory_space<vmem>>, vector<16x1xf32>
    tpu.vector_store %arg8[%c0_17, %c0_18], %22 {strides = array<i32>} : memref<16x1xf32, #tpu.memory_space<vmem>>, vector<16x1xf32>,
    return
  }
  func.func @transform_0(%arg0: i32) -> (i32, i32) {
    %c0_i32 = arith.constant 0 : i32
    %c0_i32_0 = arith.constant 0 : i32
    return %arg0, %c0_i32 : i32, i32
  }
  func.func @transform_1(%arg0: i32) -> (i32, i32) {
    %c0_i32 = arith.constant 0 : i32
    %c0_i32_0 = arith.constant 0 : i32
    %c0_i32_1 = arith.constant 0 : i32
    return %c0_i32, %c0_i32_0 : i32, i32
  }
  func.func @transform_2(%arg0: i32) -> (i32, i32) {
    %c0_i32 = arith.constant 0 : i32
    %c0_i32_0 = arith.constant 0 : i32
    %c0_i32_1 = arith.constant 0 : i32
    return %c0_i32, %c0_i32_0 : i32, i32
  }
  func.func @transform_3(%arg0: i32) -> (i32, i32) {
    %c0_i32 = arith.constant 0 : i32
    %c0_i32_0 = arith.constant 0 : i32
    %c0_i32_1 = arith.constant 0 : i32
    return %c0_i32, %c0_i32_0 : i32, i32
  }
  func.func @transform_4(%arg0: i32) -> (i32, i32) {
    %c0_i32 = arith.constant 0 : i32
    %c0_i32_0 = arith.constant 0 : i32
    %c0_i32_1 = arith.constant 0 : i32
    return %c0_i32, %c0_i32_0 : i32, i32
  }
  func.func @transform_5(%arg0: i32) -> (i32, i32) {
    %c0_i32 = arith.constant 0 : i32
    %c0_i32_0 = arith.constant 0 : i32
    %c0_i32_1 = arith.constant 0 : i32
    return %c0_i32, %c0_i32_0 : i32, i32
  }
  func.func @transform_6(%arg0: i32) -> (i32, i32) {
    %c0_i32 = arith.constant 0 : i32
    %c0_i32_0 = arith.constant 0 : i32
    %c0_i32_1 = arith.constant 0 : i32
    return %c0_i32, %c0_i32_0 : i32, i32
  }
  func.func @transform_7(%arg0: i32) -> (i32, i32) {
    %c0_i32 = arith.constant 0 : i32
    %c0_i32_0 = arith.constant 0 : i32
    return %arg0, %c0_i32 : i32, i32
  }
}

</mosaic_0001>

<llo_original>
// kernel: mlp_forward.1
$region0: #{mlp_forward.1}
  #allocation0 [shape = 'u32[]', space=smem, size = 0x4, offset = 0x4, fixed_abs, tag = 'smem constant byte address 0x4 - core index']
  #allocation1 [shape = 'u32[72,128]{1,0:T(1,128)}', space=vmem, size = 0x9000, scoped, tag = 'internal scratch']
  #allocation2 [shape = 'f32[1,1]{1,0:T(1,128)S(1)}', space=vmem, size = 0x200, scoped, tag = 'scoped memory for mlp_forward.1']
  %s0 = inlined_call_operand.hbm [shape: f32[16,32], index: 0, kind: input, shape index: {}]
  %s1 = inlined_call_operand.hbm [shape: f32[32,256], index: 1, kind: input, shape index: {}]
  %s2 = inlined_call_operand.vmem [shape: f32[1,256], index: 2, kind: input, shape index: {}]
  %s3 = inlined_call_operand.hbm [shape: f32[256,256], index: 3, kind: input, shape index: {}]
  %s4 = inlined_call_operand.vmem [shape: f32[1,256], index: 4, kind: input, shape index: {}]
  %s5 = inlined_call_operand.vmem [shape: f32[1,256], index: 5, kind: input, shape index: {}]
  %s6 = inlined_call_operand.<no memory space> [shape: f32[1,1], index: 6, kind: input, shape index: {}]
  %s7 = inlined_call_operand.vmem [shape: f32[16,1], index: 7, kind: output, shape index: {}]
  %s8 = sld [smem:[#allocation0]]
  $region50: #{mlp_forward.1} parent=0
    _
  %s10 = ssub.s32 1, %s8
  %s11 = scalar_select 0, %s10, %s8
  %v12 = vstv %s6
  %13 = vst [vmem:[#allocation2] sm:$0x1] %v12
  $region1: #{mlp_forward.1} parent=0
    #allocation3 [shape = 'u8[8192]{0}', space=vmem, size = 0x2000, scoped, tag = 'input window, operand 0, single buffered']
    #allocation4 [shape = 's32[1]{0}', space=sflag, size = 0x4, scoped, tag = 'scoped memory for mlp_forward.1']
    #allocation5 [shape = 'u8[32768]{0}', space=vmem, size = 0x8000, scoped, tag = 'input window, operand 1, single buffered']
    #allocation6 [shape = 's32[1]{0}', space=sflag, size = 0x4, scoped, tag = 'scoped memory for mlp_forward.1']
    #allocation7 [shape = 'u8[262144]{0}', space=vmem, size = 0x40000, scoped, tag = 'input window, operand 3, single buffered']
    %14 = vsyncpa [#allocation4], 0
    %15 = vsyncpa [#allocation6], 0
    // Predicated region
    $region2: #{mlp_forward.1} parent=1 // pred_check
      _
    $region3: #{mlp_forward.1} parent=1 // pred_check_branch
      %17 = sbr.rel (0) target = $region5
    $region4: #{mlp_forward.1} parent=1 // pred_region
      %19 = vsyncadd [#allocation4], 0
      %s20 = sshll.u32 %s0, 4
      %s21 = int_to_ptr.hbm [resolvable:$true] %s20
      %s22 = sshll.u32 [#allocation3], 4
      %s23 = int_to_ptr.vmem [resolvable:$true] %s22
      %28 = dma.hbm_to_vmem [thread:$0]  %s21, 256, %s23, [#allocation4], 128, 128, 8
    $region5: #{mlp_forward.1} parent=1 // pred_fallthru
      _
    // Predicated region
    $region6: #{mlp_forward.1} parent=1 // pred_check
      _
    $region7: #{mlp_forward.1} parent=1 // pred_check_branch
      %30 = sbr.rel (0) target = $region9
    $region8: #{mlp_forward.1} parent=1 // pred_region
      %32 = vsyncadd [#allocation6], 0
      %s33 = sshll.u32 %s1, 4
      %s34 = int_to_ptr.hbm [resolvable:$true] %s33
      %s35 = sshll.u32 [#allocation5], 4
      %s36 = int_to_ptr.vmem [resolvable:$true] %s35
      %41 = dma.hbm_to_vmem [thread:$0]  %s34, 1024, %s36, [#allocation6], 256, 256, 16
    $region9: #{mlp_forward.1} parent=1 // pred_fallthru
      _
    // Predicated region
    $region10: #{mlp_forward.1} parent=1 // pred_check
      _
    $region11: #{mlp_forward.1} parent=1 // pred_check_branch
      %43 = sbr.rel (0) target = $region13
    $region12: #{mlp_forward.1} parent=1 // pred_region
      _
    $region13: #{mlp_forward.1} parent=1 // pred_fallthru
      _
    // Predicated region
    $region14: #{mlp_forward.1} parent=1 // pred_check
      _
    $region15: #{mlp_forward.1} parent=1 // pred_check_branch
      %45 = sbr.rel (0) target = $region17
    $region16: #{mlp_forward.1} parent=1 // pred_region
      %47 = vsyncadd [#allocation6], 0
      %s48 = sshll.u32 %s3, 4
      %s49 = int_to_ptr.hbm [resolvable:$true] %s48
      %s50 = sshll.u32 [#allocation7], 4
      %s51 = int_to_ptr.vmem [resolvable:$true] %s50
      %56 = dma.hbm_to_vmem [thread:$0]  %s49, 8192, %s51, [#allocation6], 256, 256, 16
    $region17: #{mlp_forward.1} parent=1 // pred_fallthru
      _
    // Predicated region
    $region18: #{mlp_forward.1} parent=1 // pred_check
      _
    $region19: #{mlp_forward.1} parent=1 // pred_check_branch
      %58 = sbr.rel (0) target = $region21
    $region20: #{mlp_forward.1} parent=1 // pred_region
      _
    $region21: #{mlp_forward.1} parent=1 // pred_fallthru
      _
    // Predicated region
    $region22: #{mlp_forward.1} parent=1 // pred_check
      _
    $region23: #{mlp_forward.1} parent=1 // pred_check_branch
      %60 = sbr.rel (0) target = $region25
    $region24: #{mlp_forward.1} parent=1 // pred_region
      _
    $region25: #{mlp_forward.1} parent=1 // pred_fallthru
      _
    // Predicated region
    $region26: #{mlp_forward.1} parent=1 // pred_check
      _
    $region27: #{mlp_forward.1} parent=1 // pred_check_branch
      %62 = sbr.rel (0) target = $region29
    $region28: #{mlp_forward.1} parent=1 // pred_region
      _
    $region29: #{mlp_forward.1} parent=1 // pred_fallthru
      _
    // Predicated region
    $region30: #{mlp_forward.1} parent=1 // pred_check
      _
    $region31: #{mlp_forward.1} parent=1 // pred_check_branch
      %64 = sbr.rel (0) target = $region33
    $region32: #{mlp_forward.1} parent=1 // pred_region
      %66 = dma.done [#allocation4], 256
    $region33: #{mlp_forward.1} parent=1 // pred_fallthru
      _
    // Predicated region
    $region34: #{mlp_forward.1} parent=1 // pred_check
      _
    $region35: #{mlp_forward.1} parent=1 // pred_check_branch
      %68 = sbr.rel (0) target = $region37
    $region36: #{mlp_forward.1} parent=1 // pred_region
      %70 = dma.done [#allocation6], 1024
    $region37: #{mlp_forward.1} parent=1 // pred_fallthru
      _
    // Predicated region
    $region38: #{mlp_forward.1} parent=1 // pred_check
      _
    $region39: #{mlp_forward.1} parent=1 // pred_check_branch
      %72 = sbr.rel (0) target = $region41
    $region40: #{mlp_forward.1} parent=1 // pred_region
      %74 = dma.done [#allocation6], 8192
    $region41: #{mlp_forward.1} parent=1 // pred_fallthru
      _
    %v75 = vld [vmem:[#allocation3] sm:$0xff]
    %v76 = vld [vmem:[#allocation3 + $0x8] sm:$0xff]
    %v77 = vld [vmem:[#allocation5] sm:$0xff]
    %v78 = vld [vmem:[#allocation5 + $0x8] sm:$0xff]
    %v79 = vld [vmem:[#allocation5 + $0x10] sm:$0xff]
    %v80 = vld [vmem:[#allocation5 + $0x18] sm:$0xff]
    %v81 = vld [vmem:[#allocation5 + $0x20] sm:$0xff]
    %v82 = vld [vmem:[#allocation5 + $0x28] sm:$0xff]
    %v83 = vld [vmem:[#allocation5 + $0x30] sm:$0xff]
    %v84 = vld [vmem:[#allocation5 + $0x38] sm:$0xff]
    %v85 = vld [vmem:[%s2] sm:$0x3]
    %v87 = vperm.slane %v85, 0
    %v88 = vperm.slane %v85, 1
    %vm91 = vcmask 261120
    %v93 = vsel %vm91, %v75, 0
    %v96 = vsel %vm91, %v76, 0
    %98 = vmatpush.msra.mxu0 0.0
    %99 = vmatpush.msra.mxu0 0.0
    %100 = vmatpush.msra.mxu0 0.0
    %101 = vmatpush.msra.mxu0 0.0
    %102 = vmatpush.msra.mxu0 0.0
    %103 = vmatpush.msra.mxu0 0.0
    %104 = vmatpush.msra.mxu0 0.0
    %105 = vmatpush.msra.mxu0 0.0
    %106 = vmatpush.msra.mxu0 0.0
    %107 = vmatpush.msra.mxu0 0.0
    %108 = vmatpush.msra.mxu0 0.0
    %109 = vmatpush.msra.mxu0 0.0
    %110 = vmatpush.msra.mxu0 %v83
    %111 = vmatpush.msra.mxu0 %v81
    %112 = vmatpush.msra.mxu0 %v79
    %113 = vmatpush.msra.mxu0 %v77
    %114 = vmatmul.f32.gmra.mxu0 %v93
    %v115 = vpop.f32.mrf.mxu0
    %v116 = vadd.f32 %v87, %v115
    %117 = vmatmul.f32.gmra.mxu0 %v96
    %v118 = vpop.f32.mrf.mxu0
    %v119 = vadd.f32 %v87, %v118
    %120 = vdwg.mxu0
    %121 = vmatpush.msra.mxu0 0.0
    %122 = vmatpush.msra.mxu0 0.0
    %123 = vmatpush.msra.mxu0 0.0
    %124 = vmatpush.msra.mxu0 0.0
    %125 = vmatpush.msra.mxu0 0.0
    %126 = vmatpush.msra.mxu0 0.0
    %127 = vmatpush.msra.mxu0 0.0
    %128 = vmatpush.msra.mxu0 0.0
    %129 = vmatpush.msra.mxu0 0.0
    %130 = vmatpush.msra.mxu0 0.0
    %131 = vmatpush.msra.mxu0 0.0
    %132 = vmatpush.msra.mxu0 0.0
    %133 = vmatpush.msra.mxu0 %v84
    %134 = vmatpush.msra.mxu0 %v82
    %135 = vmatpush.msra.mxu0 %v80
    %136 = vmatpush.msra.mxu0 %v78
    %137 = vmatmul.f32.gmra.mxu0 %v93
    %v138 = vpop.f32.mrf.mxu0
    %v139 = vadd.f32 %v88, %v138
    %140 = vmatmul.f32.gmra.mxu0 %v96
    %v141 = vpop.f32.mrf.mxu0
    %v142 = vadd.f32 %v88, %v141
    %143 = vdwg.mxu0
    %v144 = vmax.f32 %v116, 0.0
    %v145 = vmax.f32 %v139, 0.0
    %v146 = vmax.f32 %v119, 0.0
    %v147 = vmax.f32 %v142, 0.0
    %v148 = vld [vmem:[#allocation7] sm:$0xff]
    %v149 = vld [vmem:[#allocation7 + $0x8] sm:$0xff]
    %v150 = vld [vmem:[#allocation7 + $0x10] sm:$0xff]
    %v151 = vld [vmem:[#allocation7 + $0x18] sm:$0xff]
    %v152 = vld [vmem:[#allocation7 + $0x20] sm:$0xff]
    %v153 = vld [vmem:[#allocation7 + $0x28] sm:$0xff]
    %v154 = vld [vmem:[#allocation7 + $0x30] sm:$0xff]
    %v155 = vld [vmem:[#allocation7 + $0x38] sm:$0xff]
    %v156 = vld [vmem:[#allocation7 + $0x40] sm:$0xff]
    %v157 = vld [vmem:[#allocation7 + $0x48] sm:$0xff]
    %v158 = vld [vmem:[#allocation7 + $0x50] sm:$0xff]
    %v159 = vld [vmem:[#allocation7 + $0x58] sm:$0xff]
    %v160 = vld [vmem:[#allocation7 + $0x60] sm:$0xff]
    %v161 = vld [vmem:[#allocation7 + $0x68] sm:$0xff]
    %v162 = vld [vmem:[#allocation7 + $0x70] sm:$0xff]
    %v163 = vld [vmem:[#allocation7 + $0x78] sm:$0xff]
    %v164 = vld [vmem:[#allocation7 + $0x80] sm:$0xff]
    %v165 = vld [vmem:[#allocation7 + $0x88] sm:$0xff]
    %v166 = vld [vmem:[#allocation7 + $0x90] sm:$0xff]
    %v167 = vld [vmem:[#allocation7 + $0x98] sm:$0xff]
    %v168 = vld [vmem:[#allocation7 + $0xa0] sm:$0xff]
    %v169 = vld [vmem:[#allocation7 + $0xa8] sm:$0xff]
    %v170 = vld [vmem:[#allocation7 + $0xb0] sm:$0xff]
    %v171 = vld [vmem:[#allocation7 + $0xb8] sm:$0xff]
    %v172 = vld [vmem:[#allocation7 + $0xc0] sm:$0xff]
    %v173 = vld [vmem:[#allocation7 + $0xc8] sm:$0xff]
    %v174 = vld [vmem:[#allocation7 + $0xd0] sm:$0xff]
    %v175 = vld [vmem:[#allocation7 + $0xd8] sm:$0xff]
    %v176 = vld [vmem:[#allocation7 + $0xe0] sm:$0xff]
    %v177 = vld [vmem:[#allocation7 + $0xe8] sm:$0xff]
    %v178 = vld [vmem:[#allocation7 + $0xf0] sm:$0xff]
    %v179 = vld [vmem:[#allocation7 + $0xf8] sm:$0xff]
    %v180 = vld [vmem:[#allocation7 + $0x100] sm:$0xff]
    %v181 = vld [vmem:[#allocation7 + $0x108] sm:$0xff]
    %v182 = vld [vmem:[#allocation7 + $0x110] sm:$0xff]
    %v183 = vld [vmem:[#allocation7 + $0x118] sm:$0xff]
    %v184 = vld [vmem:[#allocation7 + $0x120] sm:$0xff]
    %v185 = vld [vmem:[#allocation7 + $0x128] sm:$0xff]
    %v186 = vld [vmem:[#allocation7 + $0x130] sm:$0xff]
    %v187 = vld [vmem:[#allocation7 + $0x138] sm:$0xff]
    %v188 = vld [vmem:[#allocation7 + $0x140] sm:$0xff]
    %v189 = vld [vmem:[#allocation7 + $0x148] sm:$0xff]
    %v190 = vld [vmem:[#allocation7 + $0x150] sm:$0xff]
    %v191 = vld [vmem:[#allocation7 + $0x158] sm:$0xff]
    %v192 = vld [vmem:[#allocation7 + $0x160] sm:$0xff]
    %v193 = vld [vmem:[#allocation7 + $0x168] sm:$0xff]
    %v194 = vld [vmem:[#allocation7 + $0x170] sm:$0xff]
    %v195 = vld [vmem:[#allocation7 + $0x178] sm:$0xff]
    %v196 = vld [vmem:[#allocation7 + $0x180] sm:$0xff]
    %v197 = vld [vmem:[#allocation7 + $0x188] sm:$0xff]
    %v198 = vld [vmem:[#allocation7 + $0x190] sm:$0xff]
    %v199 = vld [vmem:[#allocation7 + $0x198] sm:$0xff]
    %v200 = vld [vmem:[#allocation7 + $0x1a0] sm:$0xff]
    %v201 = vld [vmem:[#allocation7 + $0x1a8] sm:$0xff]
    %v202 = vld [vmem:[#allocation7 + $0x1b0] sm:$0xff]
    %v203 = vld [vmem:[#allocation7 + $0x1b8] sm:$0xff]
    %v204 = vld [vmem:[#allocation7 + $0x1c0] sm:$0xff]
    %v205 = vld [vmem:[#allocation7 + $0x1c8] sm:$0xff]
    %v206 = vld [vmem:[#allocation7 + $0x1d0] sm:$0xff]
    %v207 = vld [vmem:[#allocation7 + $0x1d8] sm:$0xff]
    %v208 = vld [vmem:[#allocation7 + $0x1e0] sm:$0xff]
    %v209 = vld [vmem:[#allocation7 + $0x1e8] sm:$0xff]
    %v210 = vld [vmem:[#allocation7 + $0x1f0] sm:$0xff]
    %v211 = vld [vmem:[#allocation7 + $0x1f8] sm:$0xff]
    %v212 = vld [vmem:[%s4] sm:$0x3]
    %v214 = vperm.slane %v212, 0
    %v215 = vperm.slane %v212, 1
    %218 = vmatpush.msra.mxu0 %v178
    %219 = vmatpush.msra.mxu0 %v176
    %220 = vmatpush.msra.mxu0 %v174
    %221 = vmatpush.msra.mxu0 %v172
    %222 = vmatpush.msra.mxu0 %v170
    %223 = vmatpush.msra.mxu0 %v168
    %224 = vmatpush.msra.mxu0 %v166
    %225 = vmatpush.msra.mxu0 %v164
    %226 = vmatpush.msra.mxu0 %v162
    %227 = vmatpush.msra.mxu0 %v160
    %228 = vmatpush.msra.mxu0 %v158
    %229 = vmatpush.msra.mxu0 %v156
    %230 = vmatpush.msra.mxu0 %v154
    %231 = vmatpush.msra.mxu0 %v152
    %232 = vmatpush.msra.mxu0 %v150
    %233 = vmatpush.msra.mxu0 %v148
    %234 = vmatmul.f32.gmra.mxu0 %v144
    %v235 = vpop.f32.mrf.mxu0
    %v236 = vadd.f32 %v214, %v235
    %237 = vmatmul.f32.gmra.mxu0 %v146
    %v238 = vpop.f32.mrf.mxu0
    %v239 = vadd.f32 %v214, %v238
    %240 = vdwg.mxu0
    %241 = vmatpush.msra.mxu0 %v210
    %242 = vmatpush.msra.mxu0 %v208
    %243 = vmatpush.msra.mxu0 %v206
    %244 = vmatpush.msra.mxu0 %v204
    %245 = vmatpush.msra.mxu0 %v202
    %246 = vmatpush.msra.mxu0 %v200
    %247 = vmatpush.msra.mxu0 %v198
    %248 = vmatpush.msra.mxu0 %v196
    %249 = vmatpush.msra.mxu0 %v194
    %250 = vmatpush.msra.mxu0 %v192
    %251 = vmatpush.msra.mxu0 %v190
    %252 = vmatpush.msra.mxu0 %v188
    %253 = vmatpush.msra.mxu0 %v186
    %254 = vmatpush.msra.mxu0 %v184
    %255 = vmatpush.msra.mxu0 %v182
    %256 = vmatpush.msra.mxu0 %v180
    %257 = vmatmul.f32.gmra.mxu0 %v145
    %v258 = vpop.f32.mrf.mxu0
    %v259 = vadd.f32 %v236, %v258
    %260 = vmatmul.f32.gmra.mxu0 %v147
    %v261 = vpop.f32.mrf.mxu0
    %v262 = vadd.f32 %v239, %v261
    %263 = vdwg.mxu0
    %264 = vmatpush.msra.mxu0 %v179
    %265 = vmatpush.msra.mxu0 %v177
    %266 = vmatpush.msra.mxu0 %v175
    %267 = vmatpush.msra.mxu0 %v173
    %268 = vmatpush.msra.mxu0 %v171
    %269 = vmatpush.msra.mxu0 %v169
    %270 = vmatpush.msra.mxu0 %v167
    %271 = vmatpush.msra.mxu0 %v165
    %272 = vmatpush.msra.mxu0 %v163
    %273 = vmatpush.msra.mxu0 %v161
    %274 = vmatpush.msra.mxu0 %v159
    %275 = vmatpush.msra.mxu0 %v157
    %276 = vmatpush.msra.mxu0 %v155
    %277 = vmatpush.msra.mxu0 %v153
    %278 = vmatpush.msra.mxu0 %v151
    %279 = vmatpush.msra.mxu0 %v149
    %280 = vmatmul.f32.gmra.mxu0 %v144
    %v281 = vpop.f32.mrf.mxu0
    %v282 = vadd.f32 %v215, %v281
    %283 = vmatmul.f32.gmra.mxu0 %v146
    %v284 = vpop.f32.mrf.mxu0
    %v285 = vadd.f32 %v215, %v284
    %286 = vdwg.mxu0
    %287 = vmatpush.msra.mxu0 %v211
    %288 = vmatpush.msra.mxu0 %v209
    %289 = vmatpush.msra.mxu0 %v207
    %290 = vmatpush.msra.mxu0 %v205
    %291 = vmatpush.msra.mxu0 %v203
    %292 = vmatpush.msra.mxu0 %v201
    %293 = vmatpush.msra.mxu0 %v199
    %294 = vmatpush.msra.mxu0 %v197
    %295 = vmatpush.msra.mxu0 %v195
    %296 = vmatpush.msra.mxu0 %v193
    %297 = vmatpush.msra.mxu0 %v191
    %298 = vmatpush.msra.mxu0 %v189
    %299 = vmatpush.msra.mxu0 %v187
    %300 = vmatpush.msra.mxu0 %v185
    %301 = vmatpush.msra.mxu0 %v183
    %302 = vmatpush.msra.mxu0 %v181
    %303 = vmatmul.f32.gmra.mxu0 %v145
    %v304 = vpop.f32.mrf.mxu0
    %v305 = vadd.f32 %v282, %v304
    %306 = vmatmul.f32.gmra.mxu0 %v147
    %v307 = vpop.f32.mrf.mxu0
    %v308 = vadd.f32 %v285, %v307
    %309 = vdwg.mxu0
    %v310 = vmax.f32 %v259, 0.0
    %v311 = vmax.f32 %v305, 0.0
    %v312 = vmax.f32 %v262, 0.0
    %v313 = vmax.f32 %v308, 0.0
    %v314 = vld [vmem:[%s5] sm:$0x3]
    %v316 = vperm.slane %v314, 0
    %v317 = vperm.slane %v314, 1
    %v320 = vmul.f32 %v310, %v316
    %v321 = vmul.f32 %v311, %v317
    %v322 = vmul.f32 %v312, %v316
    %v323 = vmul.f32 %v313, %v317
    %v324 = vadd.f32 %v320, %v321
    %325 = vadd.xlane.f32.xlu0 %v324
    %v326 = vpop.xlane.xlu0 %325
    %v327 = vadd.f32 %v322, %v323
    %328 = vadd.xlane.f32.xlu0 %v327
    %v329 = vpop.xlane.xlu0 %328
    %v330 = vld [vmem:[#allocation2] sm:$0x1]
    %v332 = vperm.slane %v330, 0
    %v334 = vadd.f32 %v326, %v332
    %v335 = vadd.f32 %v329, %v332
    %vm336 = vcmask 7168
    %337 = vst.msk [vmem:[%s7] sm:$0xff] %vm336, %v334
    %338 = vst.msk [vmem:[%s7 + $0x8] sm:$0xff] %vm336, %v335
    // Predicated region
    $region42: #{mlp_forward.1} parent=1 // pred_check
      _
    $region43: #{mlp_forward.1} parent=1 // pred_check_branch
      %340 = sbr.rel (0) target = $region45
    $region44: #{mlp_forward.1} parent=1 // pred_region
      _
    $region45: #{mlp_forward.1} parent=1 // pred_fallthru
      _
    // Predicated region
    $region46: #{mlp_forward.1} parent=1 // pred_check
      _
    $region47: #{mlp_forward.1} parent=1 // pred_check_branch
      %342 = sbr.rel (0) target = $region49
    $region48: #{mlp_forward.1} parent=1 // pred_region
      _
    $region49: #{mlp_forward.1} parent=1 // pred_fallthru
      _
    %343 = vsyncpa [#allocation4], 1
    %344 = vsyncpa [#allocation6], 1

</llo_original>
